<compile_context>
chip_gen: v7x
topology: tpu7x:2x2x1
jax: 0.10.0
libtpu: 0.0.40
codegen_flags: <defaults>
</compile_context>

<pallas_src>
import jax
import jax.numpy as jnp
from jax.experimental import pallas as pl
from jax.experimental.pallas import tpu as pltpu

INPUT_SIZE = 3
HIDDEN_SIZE = 2
NUM_LAYERS = 2
LANE = 128
SUBLANE = 8

# packed scalar-parameter layout (see _pack_params)
_H, _I = HIDDEN_SIZE, INPUT_SIZE
_W0_OFF = 0                              # (3H, I) row-major   -> 18 scalars
_B0_OFF = _W0_OFF + 3 * _H * _I          # (3H,)               -> 6
_W1_OFF = _B0_OFF + 3 * _H               # (3H, H) row-major   -> 12
_B1_OFF = _W1_OFF + 3 * _H * _H          # (3H,)               -> 6
_WFC_OFF = _B1_OFF + 3 * _H              # (H,)                -> 2
_BFC_OFF = _WFC_OFF + _H                 # (1,)                -> 1
_N_PARAMS = _BFC_OFF + 1                 # 45


def nbp_kernel(p_ref, x_ref, out_ref):
    """One batch tile; batch is dense over both sublanes and lanes.

    p_ref   : (45,) f32 in SMEM. All weights/biases as scalars; forget-gate
              rows dropped; i/o-gate and fc rows pre-scaled by 0.5 so that
              sigmoid(z) == 0.5 * (tanh(z_scaled) + 1).
    x_ref   : (INPUT_SIZE, TR, 128) f32 -- input channel k is x_ref[k].
    out_ref : (TR, 128) f32.
    """
    H, I = HIDDEN_SIZE, INPUT_SIZE

    def lstm_cell(inp, n_in, w_off, b_off):
        # gate rows: [0:H) = i (pre-scaled), [H:2H) = g, [2H:3H) = o (pre-scaled)
        gates = []
        for j in range(3 * H):
            acc = inp[0] * p_ref[w_off + j * n_in]
            for k in range(1, n_in):
                acc = acc + inp[k] * p_ref[w_off + j * n_in + k]
            gates.append(acc + p_ref[b_off + j])
        h_out = []
        for j in range(H):
            i_g = 0.5 * (jnp.tanh(gates[j]) + 1.0)            # sigmoid (0.5 z folded into w/b)
            g_g = jnp.tanh(gates[H + j])
            o_g = 0.5 * (jnp.tanh(gates[2 * H + j]) + 1.0)    # sigmoid
            h_out.append(o_g * jnp.tanh(i_g * g_g))           # c0 = 0 -> c = i * g
        return h_out

    x = [x_ref[k] for k in range(I)]        # I slabs of (TR, 128)
    h = lstm_cell(x, I, _W0_OFF, _B0_OFF)   # LSTM layer 0 (h0 = c0 = 0)
    h = lstm_cell(h, H, _W1_OFF, _B1_OFF)   # LSTM layer 1 (h0 = c0 = 0)

    y = h[0] * p_ref[_WFC_OFF]
    for k in range(1, H):
        y = y + h[k] * p_ref[_WFC_OFF + k]
    y = y + p_ref[_BFC_OFF]
    out_ref[...] = 0.5 * (jnp.tanh(y) + 1.0)   # final sigmoid (0.5 pre-folded)


def init_params(key):
    """Deterministic PyTorch-style init: U(-1/sqrt(H), 1/sqrt(H))."""
    H, I = HIDDEN_SIZE, INPUT_SIZE
    bound = 1.0 / (H ** 0.5)
    ks = jax.random.split(key, 10)

    def u(k, shape):
        return jax.random.uniform(k, shape, jnp.float32, -bound, bound)

    return {
        "w_ih_l0": u(ks[0], (4 * H, I)),
        "w_hh_l0": u(ks[1], (4 * H, H)),   # unused at t=0 (h0 == 0)
        "b_ih_l0": u(ks[2], (4 * H,)),
        "b_hh_l0": u(ks[3], (4 * H,)),
        "w_ih_l1": u(ks[4], (4 * H, H)),
        "w_hh_l1": u(ks[5], (4 * H, H)),   # unused at t=0
        "b_ih_l1": u(ks[6], (4 * H,)),
        "b_hh_l1": u(ks[7], (4 * H,)),
        "fc_w": u(ks[8], (1, H)),
        "fc_b": u(ks[9], (1,)),
    }


def _round_up(a, m):
    return ((a + m - 1) // m) * m


def _drop_forget_gate(w):
    """PyTorch gate order (i, f, g, o) along dim 0 -> keep (i, g, o)."""
    H = HIDDEN_SIZE
    return jnp.concatenate([w[0:H], w[2 * H:4 * H]], axis=0)


def _pack_params(params):
    """Flatten all weights into one (45,) f32 vector for SMEM.

    Forget-gate rows are dropped (c0 == 0), b_ih + b_hh are fused, and the
    i/o-gate rows plus the fc head are pre-scaled by 0.5 so that the in-kernel
    sigmoid is 0.5 * (tanh(z_scaled) + 1) with no inner multiply.
    """
    H = HIDDEN_SIZE
    gate_scale = jnp.array([0.5] * H + [1.0] * H + [0.5] * H, jnp.float32)

    w0 = _drop_forget_gate(params["w_ih_l0"]) * gate_scale[:, None]           # (3H, I)
    b0 = _drop_forget_gate(params["b_ih_l0"] + params["b_hh_l0"]) * gate_scale
    w1 = _drop_forget_gate(params["w_ih_l1"]) * gate_scale[:, None]           # (3H, H)
    b1 = _drop_forget_gate(params["b_ih_l1"] + params["b_hh_l1"]) * gate_scale
    wfc = params["fc_w"].reshape(-1) * 0.5                                    # (H,)
    bfc = params["fc_b"].reshape(-1) * 0.5                                    # (1,)

    p = jnp.concatenate([w0.reshape(-1), b0, w1.reshape(-1), b1, wfc, bfc]).astype(jnp.float32)
    assert p.shape == (_N_PARAMS,)
    return p


def nbp_forward(x, params, tile_rows=512):
    """Forward pass; tile_rows * 128 batch elements per grid step."""
    B = x.shape[0]
    I = INPUT_SIZE

    # ---- batch layout: dense (rows x 128 lanes) slabs per input channel ----
    r_need = pl.cdiv(max(B, 1), LANE)
    if r_need <= tile_rows:
        tr = _round_up(r_need, SUBLANE)     # single grid step; (8,128)-aligned block
        r_pad = tr
    else:
        tr = tile_rows                      # multiple of 8
        r_pad = _round_up(r_need, tr)
    b_pad = r_pad * LANE

    x_pad = jnp.pad(x.astype(jnp.float32), ((0, b_pad - B), (0, 0)))   # (b_pad, I)
    x_t = x_pad.T.reshape(I, r_pad, LANE)                              # batch -> (row, lane)

    p = _pack_params(params)

    out = pl.pallas_call(
        nbp_kernel,
        out_shape=jax.ShapeDtypeStruct((r_pad, LANE), jnp.float32),
        grid=(r_pad // tr,),
        in_specs=[
            pl.BlockSpec(memory_space=pltpu.MemorySpace.SMEM),   # packed scalar params
            pl.BlockSpec((I, tr, LANE), lambda b: (0, b, 0)),    # x slab (auto-pipelined)
        ],
        out_specs=pl.BlockSpec((tr, LANE), lambda b: (b, 0)),    # sublane+lane dense output
        compiler_params=pltpu.CompilerParams(
            dimension_semantics=("parallel",),                   # batch tiles shard across TCs
            vmem_limit_bytes=32 * 1024 * 1024,
        ),
    )(p, x_t)

    # matches PyTorch .squeeze() on the (B, 1) fc output
    return jnp.squeeze(out.reshape(b_pad)[:B])


def nbp_forward_ref(x, params):
    """Pure-JAX reference of the same forward (sanity check)."""
    H = HIDDEN_SIZE

    def cell(inp, w_ih, b_ih, b_hh):
        g = inp @ w_ih.T + b_ih + b_hh          # h0 = 0 -> W_hh term is zero
        i = jax.nn.sigmoid(g[:, 0 * H:1 * H])
        gg = jnp.tanh(g[:, 2 * H:3 * H])
        o = jax.nn.sigmoid(g[:, 3 * H:4 * H])
        c = i * gg                              # c0 = 0 -> f gate is dead
        return o * jnp.tanh(c)

    h = cell(x, params["w_ih_l0"], params["b_ih_l0"], params["b_hh_l0"])
    h = cell(h, params["w_ih_l1"], params["b_ih_l1"], params["b_hh_l1"])
    y = h @ params["fc_w"].T + params["fc_b"]
    return jnp.squeeze(jax.nn.sigmoid(y))


if __name__ == "__main__":
    key = jax.random.PRNGKey(0)
    k_x, k_p = jax.random.split(key)

    B = 8
    x = jax.random.normal(k_x, (B, INPUT_SIZE), jnp.float32)
    params = init_params(k_p)

    out = nbp_forward(x, params)
    out = jax.block_until_ready(out)

    ref = nbp_forward_ref(x, params)
    assert out.shape == (B,), out.shape
    assert jnp.allclose(out, ref, rtol=1e-5, atol=1e-5), (out, ref)

    print("KERNEL_OK")
</pallas_src>

<mosaic_0001>
module attributes {stable_mosaic.version = 11 : i64} {
  func.func @nbp_kernel(%arg0: i32, %arg1: memref<45xf32, #tpu.memory_space<smem>>, %arg2: memref<3x8x128xf32, #tpu.memory_space<vmem>>, %arg3: memref<8x128xf32, #tpu.memory_space<vmem>>) attributes {dimension_semantics = [#tpu.dimension_semantics<parallel>], iteration_bounds = array<i64: 1>, scalar_prefetch = 0 : i64, scratch_operands = 0 : i64, tpu.core_type = #tpu.core_type<tc>, window_params = [{transform_indices = @transform_0, window_bounds = array<i64: 45>}, {transform_indices = @transform_1, window_bounds = array<i64: 3, 8, 128>}, {transform_indices = @transform_2, window_bounds = array<i64: 8, 128>}]} {
    %c0 = arith.constant 0 : index
    %c0_0 = arith.constant 0 : index
    %c0_1 = arith.constant 0 : index
    %0 = vector.load %arg2[%c0, %c0_0, %c0_1] : memref<3x8x128xf32, #tpu.memory_space<vmem>>, vector<1x8x128xf32>
    %1 = vector.shape_cast %0 : vector<1x8x128xf32> to vector<8x128xf32>
    %c1 = arith.constant 1 : index
    %c0_2 = arith.constant 0 : index
    %c0_3 = arith.constant 0 : index
    %2 = vector.load %arg2[%c1, %c0_2, %c0_3] : memref<3x8x128xf32, #tpu.memory_space<vmem>>, vector<1x8x128xf32>
    %3 = vector.shape_cast %2 : vector<1x8x128xf32> to vector<8x128xf32>
    %c2 = arith.constant 2 : index
    %c0_4 = arith.constant 0 : index
    %c0_5 = arith.constant 0 : index
    %4 = vector.load %arg2[%c2, %c0_4, %c0_5] : memref<3x8x128xf32, #tpu.memory_space<vmem>>, vector<1x8x128xf32>
    %5 = vector.shape_cast %4 : vector<1x8x128xf32> to vector<8x128xf32>
    %c0_6 = arith.constant 0 : index
    %6 = memref.load %arg1[%c0_6] : memref<45xf32, #tpu.memory_space<smem>>
    %7 = vector.broadcast %6 : f32 to vector<8x128xf32>
    %8 = arith.mulf %1, %7 : vector<8x128xf32>
    %c1_7 = arith.constant 1 : index
    %9 = memref.load %arg1[%c1_7] : memref<45xf32, #tpu.memory_space<smem>>
    %10 = vector.broadcast %9 : f32 to vector<8x128xf32>
    %11 = arith.mulf %3, %10 : vector<8x128xf32>
    %12 = arith.addf %8, %11 : vector<8x128xf32>
    %c2_8 = arith.constant 2 : index
    %13 = memref.load %arg1[%c2_8] : memref<45xf32, #tpu.memory_space<smem>>
    %14 = vector.broadcast %13 : f32 to vector<8x128xf32>
    %15 = arith.mulf %5, %14 : vector<8x128xf32>
    %16 = arith.addf %12, %15 : vector<8x128xf32>
    %c18 = arith.constant 18 : index
    %17 = memref.load %arg1[%c18] : memref<45xf32, #tpu.memory_space<smem>>
    %18 = vector.broadcast %17 : f32 to vector<8x128xf32>
    %19 = arith.addf %16, %18 : vector<8x128xf32>
    %c3 = arith.constant 3 : index
    %20 = memref.load %arg1[%c3] : memref<45xf32, #tpu.memory_space<smem>>
    %21 = vector.broadcast %20 : f32 to vector<8x128xf32>
    %22 = arith.mulf %1, %21 : vector<8x128xf32>
    %c4 = arith.constant 4 : index
    %23 = memref.load %arg1[%c4] : memref<45xf32, #tpu.memory_space<smem>>
    %24 = vector.broadcast %23 : f32 to vector<8x128xf32>
    %25 = arith.mulf %3, %24 : vector<8x128xf32>
    %26 = arith.addf %22, %25 : vector<8x128xf32>
    %c5 = arith.constant 5 : index
    %27 = memref.load %arg1[%c5] : memref<45xf32, #tpu.memory_space<smem>>
    %28 = vector.broadcast %27 : f32 to vector<8x128xf32>
    %29 = arith.mulf %5, %28 : vector<8x128xf32>
    %30 = arith.addf %26, %29 : vector<8x128xf32>
    %c19 = arith.constant 19 : index
    %31 = memref.load %arg1[%c19] : memref<45xf32, #tpu.memory_space<smem>>
    %32 = vector.broadcast %31 : f32 to vector<8x128xf32>
    %33 = arith.addf %30, %32 : vector<8x128xf32>
    %c6 = arith.constant 6 : index
    %34 = memref.load %arg1[%c6] : memref<45xf32, #tpu.memory_space<smem>>
    %35 = vector.broadcast %34 : f32 to vector<8x128xf32>
    %36 = arith.mulf %1, %35 : vector<8x128xf32>
    %c7 = arith.constant 7 : index
    %37 = memref.load %arg1[%c7] : memref<45xf32, #tpu.memory_space<smem>>
    %38 = vector.broadcast %37 : f32 to vector<8x128xf32>
    %39 = arith.mulf %3, %38 : vector<8x128xf32>
    %40 = arith.addf %36, %39 : vector<8x128xf32>
    %c8 = arith.constant 8 : index
    %41 = memref.load %arg1[%c8] : memref<45xf32, #tpu.memory_space<smem>>
    %42 = vector.broadcast %41 : f32 to vector<8x128xf32>
    %43 = arith.mulf %5, %42 : vector<8x128xf32>
    %44 = arith.addf %40, %43 : vector<8x128xf32>
    %c20 = arith.constant 20 : index
    %45 = memref.load %arg1[%c20] : memref<45xf32, #tpu.memory_space<smem>>
    %46 = vector.broadcast %45 : f32 to vector<8x128xf32>
    %47 = arith.addf %44, %46 : vector<8x128xf32>
    %c9 = arith.constant 9 : index
    %48 = memref.load %arg1[%c9] : memref<45xf32, #tpu.memory_space<smem>>
    %49 = vector.broadcast %48 : f32 to vector<8x128xf32>
    %50 = arith.mulf %1, %49 : vector<8x128xf32>
    %c10 = arith.constant 10 : index
    %51 = memref.load %arg1[%c10] : memref<45xf32, #tpu.memory_space<smem>>
    %52 = vector.broadcast %51 : f32 to vector<8x128xf32>
    %53 = arith.mulf %3, %52 : vector<8x128xf32>
    %54 = arith.addf %50, %53 : vector<8x128xf32>
    %c11 = arith.constant 11 : index
    %55 = memref.load %arg1[%c11] : memref<45xf32, #tpu.memory_space<smem>>
    %56 = vector.broadcast %55 : f32 to vector<8x128xf32>
    %57 = arith.mulf %5, %56 : vector<8x128xf32>
    %58 = arith.addf %54, %57 : vector<8x128xf32>
    %c21 = arith.constant 21 : index
    %59 = memref.load %arg1[%c21] : memref<45xf32, #tpu.memory_space<smem>>
    %60 = vector.broadcast %59 : f32 to vector<8x128xf32>
    %61 = arith.addf %58, %60 : vector<8x128xf32>
    %c12 = arith.constant 12 : index
    %62 = memref.load %arg1[%c12] : memref<45xf32, #tpu.memory_space<smem>>
    %63 = vector.broadcast %62 : f32 to vector<8x128xf32>
    %64 = arith.mulf %1, %63 : vector<8x128xf32>
    %c13 = arith.constant 13 : index
    %65 = memref.load %arg1[%c13] : memref<45xf32, #tpu.memory_space<smem>>
    %66 = vector.broadcast %65 : f32 to vector<8x128xf32>
    %67 = arith.mulf %3, %66 : vector<8x128xf32>
    %68 = arith.addf %64, %67 : vector<8x128xf32>
    %c14 = arith.constant 14 : index
    %69 = memref.load %arg1[%c14] : memref<45xf32, #tpu.memory_space<smem>>
    %70 = vector.broadcast %69 : f32 to vector<8x128xf32>
    %71 = arith.mulf %5, %70 : vector<8x128xf32>
    %72 = arith.addf %68, %71 : vector<8x128xf32>
    %c22 = arith.constant 22 : index
    %73 = memref.load %arg1[%c22] : memref<45xf32, #tpu.memory_space<smem>>
    %74 = vector.broadcast %73 : f32 to vector<8x128xf32>
    %75 = arith.addf %72, %74 : vector<8x128xf32>
    %c15 = arith.constant 15 : index
    %76 = memref.load %arg1[%c15] : memref<45xf32, #tpu.memory_space<smem>>
    %77 = vector.broadcast %76 : f32 to vector<8x128xf32>
    %78 = arith.mulf %1, %77 : vector<8x128xf32>
    %c16 = arith.constant 16 : index
    %79 = memref.load %arg1[%c16] : memref<45xf32, #tpu.memory_space<smem>>
    %80 = vector.broadcast %79 : f32 to vector<8x128xf32>
    %81 = arith.mulf %3, %80 : vector<8x128xf32>
    %82 = arith.addf %78, %81 : vector<8x128xf32>
    %c17 = arith.constant 17 : index
    %83 = memref.load %arg1[%c17] : memref<45xf32, #tpu.memory_space<smem>>
    %84 = vector.broadcast %83 : f32 to vector<8x128xf32>
    %85 = arith.mulf %5, %84 : vector<8x128xf32>
    %86 = arith.addf %82, %85 : vector<8x128xf32>
    %c23 = arith.constant 23 : index
    %87 = memref.load %arg1[%c23] : memref<45xf32, #tpu.memory_space<smem>>
    %88 = vector.broadcast %87 : f32 to vector<8x128xf32>
    %89 = arith.addf %86, %88 : vector<8x128xf32>
    %90 = math.tanh %19 : vector<8x128xf32>
    %cst = arith.constant 1.000000e+00 : f32
    %91 = vector.broadcast %cst : f32 to vector<8x128xf32>
    %92 = arith.addf %90, %91 : vector<8x128xf32>
    %cst_9 = arith.constant 5.000000e-01 : f32
    %93 = vector.broadcast %cst_9 : f32 to vector<8x128xf32>
    %94 = arith.mulf %93, %92 : vector<8x128xf32>
    %95 = math.tanh %47 : vector<8x128xf32>
    %96 = math.tanh %75 : vector<8x128xf32>
    %cst_10 = arith.constant 1.000000e+00 : f32
    %97 = vector.broadcast %cst_10 : f32 to vector<8x128xf32>
    %98 = arith.addf %96, %97 : vector<8x128xf32>
    %cst_11 = arith.constant 5.000000e-01 : f32
    %99 = vector.broadcast %cst_11 : f32 to vector<8x128xf32>
    %100 = arith.mulf %99, %98 : vector<8x128xf32>
    %101 = arith.mulf %94, %95 : vector<8x128xf32>
    %102 = math.tanh %101 : vector<8x128xf32>
    %103 = arith.mulf %100, %102 : vector<8x128xf32>
    %104 = math.tanh %33 : vector<8x128xf32>
    %cst_12 = arith.constant 1.000000e+00 : f32
    %105 = vector.broadcast %cst_12 : f32 to vector<8x128xf32>
    %106 = arith.addf %104, %105 : vector<8x128xf32>
    %cst_13 = arith.constant 5.000000e-01 : f32
    %107 = vector.broadcast %cst_13 : f32 to vector<8x128xf32>
    %108 = arith.mulf %107, %106 : vector<8x128xf32>
    %109 = math.tanh %61 : vector<8x128xf32>
    %110 = math.tanh %89 : vector<8x128xf32>
    %cst_14 = arith.constant 1.000000e+00 : f32
    %111 = vector.broadcast %cst_14 : f32 to vector<8x128xf32>
    %112 = arith.addf %110, %111 : vector<8x128xf32>
    %cst_15 = arith.constant 5.000000e-01 : f32
    %113 = vector.broadcast %cst_15 : f32 to vector<8x128xf32>
    %114 = arith.mulf %113, %112 : vector<8x128xf32>
    %115 = arith.mulf %108, %109 : vector<8x128xf32>
    %116 = math.tanh %115 : vector<8x128xf32>
    %117 = arith.mulf %114, %116 : vector<8x128xf32>
    %c24 = arith.constant 24 : index
    %118 = memref.load %arg1[%c24] : memref<45xf32, #tpu.memory_space<smem>>
    %119 = vector.broadcast %118 : f32 to vector<8x128xf32>
    %120 = arith.mulf %103, %119 : vector<8x128xf32>
    %c25 = arith.constant 25 : index
    %121 = memref.load %arg1[%c25] : memref<45xf32, #tpu.memory_space<smem>>
    %122 = vector.broadcast %121 : f32 to vector<8x128xf32>
    %123 = arith.mulf %117, %122 : vector<8x128xf32>
    %124 = arith.addf %120, %123 : vector<8x128xf32>
    %c36 = arith.constant 36 : index
    %125 = memref.load %arg1[%c36] : memref<45xf32, #tpu.memory_space<smem>>
    %126 = vector.broadcast %125 : f32 to vector<8x128xf32>
    %127 = arith.addf %124, %126 : vector<8x128xf32>
    %c26 = arith.constant 26 : index
    %128 = memref.load %arg1[%c26] : memref<45xf32, #tpu.memory_space<smem>>
    %129 = vector.broadcast %128 : f32 to vector<8x128xf32>
    %130 = arith.mulf %103, %129 : vector<8x128xf32>
    %c27 = arith.constant 27 : index
    %131 = memref.load %arg1[%c27] : memref<45xf32, #tpu.memory_space<smem>>
    %132 = vector.broadcast %131 : f32 to vector<8x128xf32>
    %133 = arith.mulf %117, %132 : vector<8x128xf32>
    %134 = arith.addf %130, %133 : vector<8x128xf32>
    %c37 = arith.constant 37 : index
    %135 = memref.load %arg1[%c37] : memref<45xf32, #tpu.memory_space<smem>>
    %136 = vector.broadcast %135 : f32 to vector<8x128xf32>
    %137 = arith.addf %134, %136 : vector<8x128xf32>
    %c28 = arith.constant 28 : index
    %138 = memref.load %arg1[%c28] : memref<45xf32, #tpu.memory_space<smem>>
    %139 = vector.broadcast %138 : f32 to vector<8x128xf32>
    %140 = arith.mulf %103, %139 : vector<8x128xf32>
    %c29 = arith.constant 29 : index
    %141 = memref.load %arg1[%c29] : memref<45xf32, #tpu.memory_space<smem>>
    %142 = vector.broadcast %141 : f32 to vector<8x128xf32>
    %143 = arith.mulf %117, %142 : vector<8x128xf32>
    %144 = arith.addf %140, %143 : vector<8x128xf32>
    %c38 = arith.constant 38 : index
    %145 = memref.load %arg1[%c38] : memref<45xf32, #tpu.memory_space<smem>>
    %146 = vector.broadcast %145 : f32 to vector<8x128xf32>
    %147 = arith.addf %144, %146 : vector<8x128xf32>
    %c30 = arith.constant 30 : index
    %148 = memref.load %arg1[%c30] : memref<45xf32, #tpu.memory_space<smem>>
    %149 = vector.broadcast %148 : f32 to vector<8x128xf32>
    %150 = arith.mulf %103, %149 : vector<8x128xf32>
    %c31 = arith.constant 31 : index
    %151 = memref.load %arg1[%c31] : memref<45xf32, #tpu.memory_space<smem>>
    %152 = vector.broadcast %151 : f32 to vector<8x128xf32>
    %153 = arith.mulf %117, %152 : vector<8x128xf32>
    %154 = arith.addf %150, %153 : vector<8x128xf32>
    %c39 = arith.constant 39 : index
    %155 = memref.load %arg1[%c39] : memref<45xf32, #tpu.memory_space<smem>>
    %156 = vector.broadcast %155 : f32 to vector<8x128xf32>
    %157 = arith.addf %154, %156 : vector<8x128xf32>
    %c32 = arith.constant 32 : index
    %158 = memref.load %arg1[%c32] : memref<45xf32, #tpu.memory_space<smem>>
    %159 = vector.broadcast %158 : f32 to vector<8x128xf32>
    %160 = arith.mulf %103, %159 : vector<8x128xf32>
    %c33 = arith.constant 33 : index
    %161 = memref.load %arg1[%c33] : memref<45xf32, #tpu.memory_space<smem>>
    %162 = vector.broadcast %161 : f32 to vector<8x128xf32>
    %163 = arith.mulf %117, %162 : vector<8x128xf32>
    %164 = arith.addf %160, %163 : vector<8x128xf32>
    %c40 = arith.constant 40 : index
    %165 = memref.load %arg1[%c40] : memref<45xf32, #tpu.memory_space<smem>>
    %166 = vector.broadcast %165 : f32 to vector<8x128xf32>
    %167 = arith.addf %164, %166 : vector<8x128xf32>
    %c34 = arith.constant 34 : index
    %168 = memref.load %arg1[%c34] : memref<45xf32, #tpu.memory_space<smem>>
    %169 = vector.broadcast %168 : f32 to vector<8x128xf32>
    %170 = arith.mulf %103, %169 : vector<8x128xf32>
    %c35 = arith.constant 35 : index
    %171 = memref.load %arg1[%c35] : memref<45xf32, #tpu.memory_space<smem>>
    %172 = vector.broadcast %171 : f32 to vector<8x128xf32>
    %173 = arith.mulf %117, %172 : vector<8x128xf32>
    %174 = arith.addf %170, %173 : vector<8x128xf32>
    %c41 = arith.constant 41 : index
    %175 = memref.load %arg1[%c41] : memref<45xf32, #tpu.memory_space<smem>>
    %176 = vector.broadcast %175 : f32 to vector<8x128xf32>
    %177 = arith.addf %174, %176 : vector<8x128xf32>
    %178 = math.tanh %127 : vector<8x128xf32>
    %cst_16 = arith.constant 1.000000e+00 : f32
    %179 = vector.broadcast %cst_16 : f32 to vector<8x128xf32>
    %180 = arith.addf %178, %179 : vector<8x128xf32>
    %cst_17 = arith.constant 5.000000e-01 : f32
    %181 = vector.broadcast %cst_17 : f32 to vector<8x128xf32>
    %182 = arith.mulf %181, %180 : vector<8x128xf32>
    %183 = math.tanh %147 : vector<8x128xf32>
    %184 = math.tanh %167 : vector<8x128xf32>
    %cst_18 = arith.constant 1.000000e+00 : f32
    %185 = vector.broadcast %cst_18 : f32 to vector<8x128xf32>
    %186 = arith.addf %184, %185 : vector<8x128xf32>
    %cst_19 = arith.constant 5.000000e-01 : f32
    %187 = vector.broadcast %cst_19 : f32 to vector<8x128xf32>
    %188 = arith.mulf %187, %186 : vector<8x128xf32>
    %189 = arith.mulf %182, %183 : vector<8x128xf32>
    %190 = math.tanh %189 : vector<8x128xf32>
    %191 = arith.mulf %188, %190 : vector<8x128xf32>
    %192 = math.tanh %137 : vector<8x128xf32>
    %cst_20 = arith.constant 1.000000e+00 : f32
    %193 = vector.broadcast %cst_20 : f32 to vector<8x128xf32>
    %194 = arith.addf %192, %193 : vector<8x128xf32>
    %cst_21 = arith.constant 5.000000e-01 : f32
    %195 = vector.broadcast %cst_21 : f32 to vector<8x128xf32>
    %196 = arith.mulf %195, %194 : vector<8x128xf32>
    %197 = math.tanh %157 : vector<8x128xf32>
    %198 = math.tanh %177 : vector<8x128xf32>
    %cst_22 = arith.constant 1.000000e+00 : f32
    %199 = vector.broadcast %cst_22 : f32 to vector<8x128xf32>
    %200 = arith.addf %198, %199 : vector<8x128xf32>
    %cst_23 = arith.constant 5.000000e-01 : f32
    %201 = vector.broadcast %cst_23 : f32 to vector<8x128xf32>
    %202 = arith.mulf %201, %200 : vector<8x128xf32>
    %203 = arith.mulf %196, %197 : vector<8x128xf32>
    %204 = math.tanh %203 : vector<8x128xf32>
    %205 = arith.mulf %202, %204 : vector<8x128xf32>
    %c42 = arith.constant 42 : index
    %206 = memref.load %arg1[%c42] : memref<45xf32, #tpu.memory_space<smem>>
    %207 = vector.broadcast %206 : f32 to vector<8x128xf32>
    %208 = arith.mulf %191, %207 : vector<8x128xf32>
    %c43 = arith.constant 43 : index
    %209 = memref.load %arg1[%c43] : memref<45xf32, #tpu.memory_space<smem>>
    %210 = vector.broadcast %209 : f32 to vector<8x128xf32>
    %211 = arith.mulf %205, %210 : vector<8x128xf32>
    %212 = arith.addf %208, %211 : vector<8x128xf32>
    %c44 = arith.constant 44 : index
    %213 = memref.load %arg1[%c44] : memref<45xf32, #tpu.memory_space<smem>>
    %214 = vector.broadcast %213 : f32 to vector<8x128xf32>
    %215 = arith.addf %212, %214 : vector<8x128xf32>
    %216 = math.tanh %215 : vector<8x128xf32>
    %cst_24 = arith.constant 1.000000e+00 : f32
    %217 = vector.broadcast %cst_24 : f32 to vector<8x128xf32>
    %218 = arith.addf %216, %217 : vector<8x128xf32>
    %cst_25 = arith.constant 5.000000e-01 : f32
    %219 = vector.broadcast %cst_25 : f32 to vector<8x128xf32>
    %220 = arith.mulf %219, %218 : vector<8x128xf32>
    %c0_26 = arith.constant 0 : index
    %c0_27 = arith.constant 0 : index
    %221 = vector.load %arg3[%c0_26, %c0_27] : memref<8x128xf32, #tpu.memory_space<vmem>>, vector<8x128xf32>
    tpu.vector_store %arg3[%c0_26, %c0_27], %220 {strides = array<i32>} : memref<8x128xf32, #tpu.memory_space<vmem>>, vector<8x128xf32>,
    return
  }
  func.func @transform_0(%arg0: i32) -> i32 {
    %c0_i32 = arith.constant 0 : i32
    %c0_i32_0 = arith.constant 0 : i32
    return %c0_i32 : i32
  }
  func.func @transform_1(%arg0: i32) -> (i32, i32, i32) {
    %c0_i32 = arith.constant 0 : i32
    %c0_i32_0 = arith.constant 0 : i32
    %c0_i32_1 = arith.constant 0 : i32
    return %c0_i32, %arg0, %c0_i32_0 : i32, i32, i32
  }
  func.func @transform_2(%arg0: i32) -> (i32, i32) {
    %c0_i32 = arith.constant 0 : i32
    %c0_i32_0 = arith.constant 0 : i32
    return %arg0, %c0_i32 : i32, i32
  }
}

</mosaic_0001>

<llo_original>
// kernel: tpu_custom_call.1
$region0: #{tpu_custom_call.1}
  #allocation0 [shape = 'u32[]', space=smem, size = 0x4, offset = 0x4, fixed_abs, tag = 'smem constant byte address 0x4 - core index']
  #allocation1 [shape = 'u32[144,128]{1,0:T(1,128)}', space=vmem, size = 0x12000, scoped, tag = 'internal scratch']
  %s0 = inlined_call_operand.hbm [shape: f32[45], index: 0, kind: input, shape index: {}]
  %s1 = inlined_call_operand.hbm [shape: f32[3,8,128], index: 1, kind: input, shape index: {}]
  %s2 = inlined_call_operand.hbm [shape: f32[8,128], index: 2, kind: output, shape index: {}]
  %s3 = sld [smem:[#allocation0]]
  $region26: #{tpu_custom_call.1} parent=0
    _
  %s5 = ssub.s32 1, %s3
  %s6 = scalar_select 0, %s5, %s3
  $region1: #{tpu_custom_call.1} parent=0
    #allocation2 [shape = 'u8[512]{0}', space=smem, size = 0x200, scoped, tag = 'input window, operand 0, single buffered']
    #allocation3 [shape = 's32[1]{0}', space=sflag, size = 0x4, scoped, tag = 'scoped memory for tpu_custom_call.1']
    #allocation4 [shape = 's32[1]{0}', space=sflag, size = 0x4, scoped, tag = 'scoped memory for tpu_custom_call.1']
    #allocation5 [shape = 's32[1]{0}', space=sflag, size = 0x4, scoped, tag = 'scoped memory for tpu_custom_call.1']
    #allocation6 [shape = 'u8[12288]{0}', space=vmem, size = 0x3000, scoped, tag = 'input window, operand 1, single buffered']
    #allocation7 [shape = 'u8[4096]{0}', space=vmem, size = 0x1000, scoped, tag = 'output window, operand 0, single buffered']
    %7 = vsyncpa [#allocation5], 0
    %8 = vsyncpa [#allocation3], 0
    %9 = vsyncpa [#allocation4], 0
    // Predicated region
    $region2: #{tpu_custom_call.1} parent=1 // pred_check
      _
    $region3: #{tpu_custom_call.1} parent=1 // pred_check_branch
      %11 = sbr.rel (0) target = $region5
    $region4: #{tpu_custom_call.1} parent=1 // pred_region
      %s13 = ssub.s32 16, 16
      %14 = vsyncadd [#allocation5], %s13
      %17 = dma.hbm_to_smem %s0, 16, [#allocation2], [#allocation5]
    $region5: #{tpu_custom_call.1} parent=1 // pred_fallthru
      _
    // Predicated region
    $region6: #{tpu_custom_call.1} parent=1 // pred_check
      _
    $region7: #{tpu_custom_call.1} parent=1 // pred_check_branch
      %19 = sbr.rel (0) target = $region9
    $region8: #{tpu_custom_call.1} parent=1 // pred_region
      %s21 = ssub.s32 384, 384
      %22 = vsyncadd [#allocation3], %s21
      %s23 = sshll.u32 [#allocation6], 4
      %s24 = int_to_ptr.vmem [resolvable:$true] %s23
      %29 = dma.hbm_to_vmem [thread:$0]  %s1, 384, %s24, [#allocation3], 128, 128, 8
    $region9: #{tpu_custom_call.1} parent=1 // pred_fallthru
      _
    // Predicated region
    $region10: #{tpu_custom_call.1} parent=1 // pred_check
      _
    $region11: #{tpu_custom_call.1} parent=1 // pred_check_branch
      %31 = sbr.rel (0) target = $region13
    $region12: #{tpu_custom_call.1} parent=1 // pred_region
      %32 = dma.done [#allocation5], 16
    $region13: #{tpu_custom_call.1} parent=1 // pred_fallthru
      _
    // Predicated region
    $region14: #{tpu_custom_call.1} parent=1 // pred_check
      _
    $region15: #{tpu_custom_call.1} parent=1 // pred_check_branch
      %34 = sbr.rel (0) target = $region17
    $region16: #{tpu_custom_call.1} parent=1 // pred_region
      %35 = dma.done [#allocation3], 384
    $region17: #{tpu_custom_call.1} parent=1 // pred_fallthru
      _
    %36 = sfence
    %v37 = vld [vmem:[#allocation6] sm:$0xff]
    %s38 = scalar_lea.vmem [#allocation6], 8
    %v39 = vld [vmem:[%s38] sm:$0xff]
    %s40 = scalar_lea.vmem [#allocation6], 16
    %v41 = vld [vmem:[%s40] sm:$0xff]
    %s42 = sld [smem:[#allocation2]]
    %v43 = vstv %s42
    %v44 = vmul.f32 %v37, %v43
    %s45 = sld [smem:[#allocation2 + $0x1]]
    %v46 = vstv %s45
    %v47 = vmul.f32 %v39, %v46
    %v48 = vadd.f32 %v44, %v47
    %s49 = sld [smem:[#allocation2 + $0x2]]
    %v50 = vstv %s49
    %v51 = vmul.f32 %v41, %v50
    %v52 = vadd.f32 %v48, %v51
    %s53 = sld [smem:[#allocation2 + $0x12]]
    %v54 = vstv %s53
    %v55 = vadd.f32 %v52, %v54
    %s56 = sld [smem:[#allocation2 + $0x3]]
    %v57 = vstv %s56
    %v58 = vmul.f32 %v37, %v57
    %s59 = sld [smem:[#allocation2 + $0x4]]
    %v60 = vstv %s59
    %v61 = vmul.f32 %v39, %v60
    %v62 = vadd.f32 %v58, %v61
    %s63 = sld [smem:[#allocation2 + $0x5]]
    %v64 = vstv %s63
    %v65 = vmul.f32 %v41, %v64
    %v66 = vadd.f32 %v62, %v65
    %s67 = sld [smem:[#allocation2 + $0x13]]
    %v68 = vstv %s67
    %v69 = vadd.f32 %v66, %v68
    %s70 = sld [smem:[#allocation2 + $0x6]]
    %v71 = vstv %s70
    %v72 = vmul.f32 %v37, %v71
    %s73 = sld [smem:[#allocation2 + $0x7]]
    %v74 = vstv %s73
    %v75 = vmul.f32 %v39, %v74
    %v76 = vadd.f32 %v72, %v75
    %s77 = sld [smem:[#allocation2 + $0x8]]
    %v78 = vstv %s77
    %v79 = vmul.f32 %v41, %v78
    %v80 = vadd.f32 %v76, %v79
    %s81 = sld [smem:[#allocation2 + $0x14]]
    %v82 = vstv %s81
    %v83 = vadd.f32 %v80, %v82
    %s84 = sld [smem:[#allocation2 + $0x9]]
    %v85 = vstv %s84
    %v86 = vmul.f32 %v37, %v85
    %s87 = sld [smem:[#allocation2 + $0xa]]
    %v88 = vstv %s87
    %v89 = vmul.f32 %v39, %v88
    %v90 = vadd.f32 %v86, %v89
    %s91 = sld [smem:[#allocation2 + $0xb]]
    %v92 = vstv %s91
    %v93 = vmul.f32 %v41, %v92
    %v94 = vadd.f32 %v90, %v93
    %s95 = sld [smem:[#allocation2 + $0x15]]
    %v96 = vstv %s95
    %v97 = vadd.f32 %v94, %v96
    %s98 = sld [smem:[#allocation2 + $0xc]]
    %v99 = vstv %s98
    %v100 = vmul.f32 %v37, %v99
    %s101 = sld [smem:[#allocation2 + $0xd]]
    %v102 = vstv %s101
    %v103 = vmul.f32 %v39, %v102
    %v104 = vadd.f32 %v100, %v103
    %s105 = sld [smem:[#allocation2 + $0xe]]
    %v106 = vstv %s105
    %v107 = vmul.f32 %v41, %v106
    %v108 = vadd.f32 %v104, %v107
    %s109 = sld [smem:[#allocation2 + $0x16]]
    %v110 = vstv %s109
    %v111 = vadd.f32 %v108, %v110
    %s112 = sld [smem:[#allocation2 + $0xf]]
    %v113 = vstv %s112
    %v114 = vmul.f32 %v37, %v113
    %s115 = sld [smem:[#allocation2 + $0x10]]
    %v116 = vstv %s115
    %v117 = vmul.f32 %v39, %v116
    %v118 = vadd.f32 %v114, %v117
    %s119 = sld [smem:[#allocation2 + $0x11]]
    %v120 = vstv %s119
    %v121 = vmul.f32 %v41, %v120
    %v122 = vadd.f32 %v118, %v121
    %s123 = sld [smem:[#allocation2 + $0x17]]
    %v124 = vstv %s123
    %v125 = vadd.f32 %v122, %v124
    %v126 = vtanh.pop %v55
    %v127 = vadd.f32 %v126, 1.0
    %v128 = vmul.f32 %v127, 0.5
    %v129 = vtanh.pop %v83
    %v130 = vtanh.pop %v111
    %v131 = vadd.f32 %v130, 1.0
    %v132 = vmul.f32 %v131, 0.5
    %v133 = vmul.f32 %v128, %v129
    %v134 = vtanh.pop %v133
    %v135 = vmul.f32 %v132, %v134
    %v136 = vtanh.pop %v69
    %v137 = vadd.f32 %v136, 1.0
    %v138 = vmul.f32 %v137, 0.5
    %v139 = vtanh.pop %v97
    %v140 = vtanh.pop %v125
    %v141 = vadd.f32 %v140, 1.0
    %v142 = vmul.f32 %v141, 0.5
    %v143 = vmul.f32 %v138, %v139
    %v144 = vtanh.pop %v143
    %v145 = vmul.f32 %v142, %v144
    %s146 = sld [smem:[#allocation2 + $0x18]]
    %v147 = vstv %s146
    %v148 = vmul.f32 %v135, %v147
    %s149 = sld [smem:[#allocation2 + $0x19]]
    %v150 = vstv %s149
    %v151 = vmul.f32 %v145, %v150
    %v152 = vadd.f32 %v148, %v151
    %s153 = sld [smem:[#allocation2 + $0x24]]
    %v154 = vstv %s153
    %v155 = vadd.f32 %v152, %v154
    %s156 = sld [smem:[#allocation2 + $0x1a]]
    %v157 = vstv %s156
    %v158 = vmul.f32 %v135, %v157
    %s159 = sld [smem:[#allocation2 + $0x1b]]
    %v160 = vstv %s159
    %v161 = vmul.f32 %v145, %v160
    %v162 = vadd.f32 %v158, %v161
    %s163 = sld [smem:[#allocation2 + $0x25]]
    %v164 = vstv %s163
    %v165 = vadd.f32 %v162, %v164
    %s166 = sld [smem:[#allocation2 + $0x1c]]
    %v167 = vstv %s166
    %v168 = vmul.f32 %v135, %v167
    %s169 = sld [smem:[#allocation2 + $0x1d]]
    %v170 = vstv %s169
    %v171 = vmul.f32 %v145, %v170
    %v172 = vadd.f32 %v168, %v171
    %s173 = sld [smem:[#allocation2 + $0x26]]
    %v174 = vstv %s173
    %v175 = vadd.f32 %v172, %v174
    %s176 = sld [smem:[#allocation2 + $0x1e]]
    %v177 = vstv %s176
    %v178 = vmul.f32 %v135, %v177
    %s179 = sld [smem:[#allocation2 + $0x1f]]
    %v180 = vstv %s179
    %v181 = vmul.f32 %v145, %v180
    %v182 = vadd.f32 %v178, %v181
    %s183 = sld [smem:[#allocation2 + $0x27]]
    %v184 = vstv %s183
    %v185 = vadd.f32 %v182, %v184
    %s186 = sld [smem:[#allocation2 + $0x20]]
    %v187 = vstv %s186
    %v188 = vmul.f32 %v135, %v187
    %s189 = sld [smem:[#allocation2 + $0x21]]
    %v190 = vstv %s189
    %v191 = vmul.f32 %v145, %v190
    %v192 = vadd.f32 %v188, %v191
    %s193 = sld [smem:[#allocation2 + $0x28]]
    %v194 = vstv %s193
    %v195 = vadd.f32 %v192, %v194
    %s196 = sld [smem:[#allocation2 + $0x22]]
    %v197 = vstv %s196
    %v198 = vmul.f32 %v135, %v197
    %s199 = sld [smem:[#allocation2 + $0x23]]
    %v200 = vstv %s199
    %v201 = vmul.f32 %v145, %v200
    %v202 = vadd.f32 %v198, %v201
    %s203 = sld [smem:[#allocation2 + $0x29]]
    %v204 = vstv %s203
    %v205 = vadd.f32 %v202, %v204
    %v206 = vtanh.pop %v155
    %v207 = vadd.f32 %v206, 1.0
    %v208 = vmul.f32 %v207, 0.5
    %v209 = vtanh.pop %v175
    %v210 = vtanh.pop %v195
    %v211 = vadd.f32 %v210, 1.0
    %v212 = vmul.f32 %v211, 0.5
    %v213 = vmul.f32 %v208, %v209
    %v214 = vtanh.pop %v213
    %v215 = vmul.f32 %v212, %v214
    %v216 = vtanh.pop %v165
    %v217 = vadd.f32 %v216, 1.0
    %v218 = vmul.f32 %v217, 0.5
    %v219 = vtanh.pop %v185
    %v220 = vtanh.pop %v205
    %v221 = vadd.f32 %v220, 1.0
    %v222 = vmul.f32 %v221, 0.5
    %v223 = vmul.f32 %v218, %v219
    %v224 = vtanh.pop %v223
    %v225 = vmul.f32 %v222, %v224
    %s226 = sld [smem:[#allocation2 + $0x2a]]
    %v227 = vstv %s226
    %v228 = vmul.f32 %v215, %v227
    %s229 = sld [smem:[#allocation2 + $0x2b]]
    %v230 = vstv %s229
    %v231 = vmul.f32 %v225, %v230
    %v232 = vadd.f32 %v228, %v231
    %s233 = sld [smem:[#allocation2 + $0x2c]]
    %v234 = vstv %s233
    %v235 = vadd.f32 %v232, %v234
    %v236 = vtanh.pop %v235
    %v237 = vadd.f32 %v236, 1.0
    %v238 = vmul.f32 %v237, 0.5
    %239 = vst [vmem:[#allocation7] sm:$0xff] %v238
    // Predicated region
    $region18: #{tpu_custom_call.1} parent=1 // pred_check
      _
    $region19: #{tpu_custom_call.1} parent=1 // pred_check_branch
      %241 = sbr.rel (0) target = $region21
    $region20: #{tpu_custom_call.1} parent=1 // pred_region
      %s243 = ssub.s32 128, 128
      %244 = vsyncadd [#allocation4], %s243
      %s246 = sshll.u32 [#allocation7], 4
      %s247 = int_to_ptr.vmem [resolvable:$true] %s246
      %249 = dma.vmem_to_hbm [thread:$0]  %s247, 128, %s2, [#allocation4]
    $region21: #{tpu_custom_call.1} parent=1 // pred_fallthru
      _
    // Predicated region
    $region22: #{tpu_custom_call.1} parent=1 // pred_check
      _
    $region23: #{tpu_custom_call.1} parent=1 // pred_check_branch
      %251 = sbr.rel (0) target = $region25
    $region24: #{tpu_custom_call.1} parent=1 // pred_region
      %252 = dma.done [#allocation4], 128
    $region25: #{tpu_custom_call.1} parent=1 // pred_fallthru
      _
    %253 = vsyncpa [#allocation3], 1
    %254 = vsyncpa [#allocation4], 1
    %255 = vsyncpa [#allocation5], 1

</llo_original>
